<compile_context>
chip_gen: v5e
topology: v5e:2x2
jax: 0.10.0
libtpu: 0.0.40
codegen_flags: <defaults>
</compile_context>

<pallas_src>
import functools

import jax
import jax.numpy as jnp
from jax.experimental import pallas as pl
from jax.experimental.pallas import tpu as pltpu

GAMMA = -0.1
ZETA = 1.1


def _round_up(n, m):
    return (n + m - 1) // m * m


def _adaround_kernel(x_ref, s_ref, z_ref, o_ref, *, quant_min, quant_max):
    x = x_ref[...]            # (toc, Dp) f32
    s = s_ref[...]            # (toc, 1)  f32, broadcasts over lanes
    z = z_ref[...]            # (toc, 1)  f32

    # learned_hard_sigmoid with freshly-initialized alpha == round-to-nearest
    # (soft target is analytically identical to `rest`, see header comment).
    q = jnp.clip(jnp.round(x / s + z), quant_min, quant_max)
    o_ref[...] = (q - z) * s


def adaround_quantizer_forward(w, scale, zero_point, *, bit=8, target_block_bytes=2 << 20):
    """w: (OC, IC, KH, KW) f32; scale/zero_point: (OC, 1, 1, 1) f32 (level 'C')."""
    oc, ic, kh, kw = w.shape
    d = ic * kh * kw

    quant_min = float(-(1 << (bit - 1)))
    quant_max = float((1 << (bit - 1)) - 1)

    # Lane-dense feature dim: pad D to a multiple of 128.
    dp = _round_up(d, 128)

    # Row tile: multiple of 8, ~target_block_bytes per (toc, dp) f32 input block,
    # never larger than the (8-padded) channel count.
    oc8 = _round_up(oc, 8)
    toc = max(8, (target_block_bytes // (4 * dp)) // 8 * 8)
    toc = min(toc, oc8)
    # Prefer >= 2 grid steps when possible (software pipelining / megacore sharding).
    if oc8 > 8 and _round_up(oc8, toc) // toc < 2:
        toc = max(8, _round_up((oc8 + 1) // 2, 8))
    ocp = _round_up(oc8, toc)
    grid = (ocp // toc,)

    # Build the padded, lane-dense slabs.  Padded rows get scale=1 / zp=0 so the
    # kernel math stays finite; padded output is sliced off below.
    w2 = jnp.pad(w.reshape(oc, d).astype(jnp.float32), ((0, ocp - oc), (0, dp - d)))
    s2 = jnp.pad(scale.reshape(oc, 1).astype(jnp.float32), ((0, ocp - oc), (0, 0)),
                 constant_values=1.0)
    z2 = jnp.pad(zero_point.reshape(oc, 1).astype(jnp.float32), ((0, ocp - oc), (0, 0)))

    kernel = functools.partial(_adaround_kernel, quant_min=quant_min, quant_max=quant_max)

    out2 = pl.pallas_call(
        kernel,
        out_shape=jax.ShapeDtypeStruct((ocp, dp), jnp.float32),
        grid_spec=pl.GridSpec(
            grid=grid,
            in_specs=[
                pl.BlockSpec((toc, dp), lambda i: (i, 0)),
                pl.BlockSpec((toc, 1), lambda i: (i, 0)),
                pl.BlockSpec((toc, 1), lambda i: (i, 0)),
            ],
            out_specs=pl.BlockSpec((toc, dp), lambda i: (i, 0)),
        ),
        # Elementwise & shape/dtype-matched: let the output reuse the padded
        # input slab's HBM buffer (removes a second OCp*Dp*4-byte allocation).
        input_output_aliases={0: 0},
        compiler_params=pltpu.CompilerParams(dimension_semantics=("parallel",)),
    )(w2, s2, z2)

    return out2[:oc, :d].reshape(oc, ic, kh, kw)


def _reference_exact(w, scale, zero_point, *, bit=8):
    """Simplified-but-exact semantics of the module's first-call inference path."""
    qmin = float(-(1 << (bit - 1)))
    qmax = float((1 << (bit - 1)) - 1)
    q = jnp.clip(jnp.round(w / scale + zero_point), qmin, qmax)
    return (q - zero_point) * scale


def _reference_literal(w, scale, zero_point, *, bit=8):
    """Line-by-line mirror of the PyTorch forward (init_alpha -> soft targets)."""
    qmin = float(-(1 << (bit - 1)))
    qmax = float((1 << (bit - 1)) - 1)
    xs = w / scale
    x_floor = jnp.floor(xs)
    rest = xs - x_floor
    alpha = -jnp.log((ZETA - GAMMA) / (rest - GAMMA) - 1.0)
    soft = jnp.clip(jax.nn.sigmoid(alpha) * (ZETA - GAMMA) + GAMMA, 0.0, 1.0)
    q = jnp.clip(jnp.round(x_floor + soft + zero_point), qmin, qmax)
    return (q - zero_point) * scale


if __name__ == "__main__":
    key = jax.random.PRNGKey(0)
    # Conv weight tensor (OC, IC, KH, KW); observer.level == 'C' -> per-OC qparams.
    OC, IC, KH, KW = 16, 4, 3, 3
    bit = 8

    kw_, ks = jax.random.split(key)
    w = jax.random.normal(kw_, (OC, IC, KH, KW), dtype=jnp.float32) * 0.5

    # Deterministic post-calibration buffer values (shapes from __init__, level 'C').
    scale = (0.02 + 0.005 * jnp.arange(OC, dtype=jnp.float32)).reshape(OC, 1, 1, 1)
    zero_point = jnp.round(
        jax.random.uniform(ks, (OC, 1, 1, 1), dtype=jnp.float32, minval=-4.0, maxval=4.0)
    )

    fwd = jax.jit(adaround_quantizer_forward, static_argnames=("bit",))
    out = jax.block_until_ready(fwd(w, scale, zero_point, bit=bit))

    assert out.shape == w.shape and out.dtype == jnp.float32

    # Tight check against the exact (simplified) semantics.
    ref = _reference_exact(w, scale, zero_point, bit=bit)
    assert jnp.allclose(out, ref, atol=1e-5, rtol=1e-5), "mismatch vs exact reference"

    # Soft check against the literal log/sigmoid formulation: any deviation can be
    # at most one quantization step (only when x/s sits within a few ULP of .5).
    ref_lit = _reference_literal(w, scale, zero_point, bit=bit)
    assert float(jnp.max(jnp.abs(out - ref_lit) / scale)) <= 1.0001, \
        "mismatch vs literal PyTorch-mirror reference"

    # TODO(synk): observer / update_qparams (OMSE grid search) and the training-time
    # learned-alpha / PTQ branches are stateful calibration, not part of this
    # inference hot path.
    print("KERNEL_OK")
</pallas_src>

<mosaic_0001>
module attributes {stable_mosaic.version = 11 : i64} {
  func.func @_adaround_kernel(%arg0: i32, %arg1: memref<8x128xf32, #tpu.memory_space<vmem>>, %arg2: memref<8x1xf32, #tpu.memory_space<vmem>>, %arg3: memref<8x1xf32, #tpu.memory_space<vmem>>, %arg4: memref<8x128xf32, #tpu.memory_space<vmem>>) attributes {dimension_semantics = [#tpu.dimension_semantics<parallel>], iteration_bounds = array<i64: 2>, scalar_prefetch = 0 : i64, scratch_operands = 0 : i64, tpu.core_type = #tpu.core_type<tc>, window_params = [{transform_indices = @transform_0, window_bounds = array<i64: 8, 128>}, {transform_indices = @transform_1, window_bounds = array<i64: 8, 1>}, {transform_indices = @transform_2, window_bounds = array<i64: 8, 1>}, {transform_indices = @transform_3, window_bounds = array<i64: 8, 128>}]} {
    %c0 = arith.constant 0 : index
    %c0_0 = arith.constant 0 : index
    %0 = vector.load %arg1[%c0, %c0_0] : memref<8x128xf32, #tpu.memory_space<vmem>>, vector<8x128xf32>
    %c0_1 = arith.constant 0 : index
    %c0_2 = arith.constant 0 : index
    %1 = vector.load %arg2[%c0_1, %c0_2] : memref<8x1xf32, #tpu.memory_space<vmem>>, vector<8x1xf32>
    %c0_3 = arith.constant 0 : index
    %c0_4 = arith.constant 0 : index
    %2 = vector.load %arg3[%c0_3, %c0_4] : memref<8x1xf32, #tpu.memory_space<vmem>>, vector<8x1xf32>
    %3 = vector.broadcast %1 : vector<8x1xf32> to vector<8x128xf32>
    %4 = arith.divf %0, %3 : vector<8x128xf32>
    %5 = vector.broadcast %2 : vector<8x1xf32> to vector<8x128xf32>
    %6 = arith.addf %4, %5 : vector<8x128xf32>
    %7 = math.roundeven %6 : vector<8x128xf32>
    %cst = arith.constant -1.280000e+02 : f32
    %cst_5 = arith.constant 1.270000e+02 : f32
    %8 = vector.broadcast %cst : f32 to vector<8x128xf32>
    %9 = arith.maximumf %8, %7 : vector<8x128xf32>
    %10 = vector.broadcast %cst_5 : f32 to vector<8x128xf32>
    %11 = arith.minimumf %10, %9 : vector<8x128xf32>
    %12 = vector.broadcast %2 : vector<8x1xf32> to vector<8x128xf32>
    %13 = arith.subf %11, %12 : vector<8x128xf32>
    %14 = vector.broadcast %1 : vector<8x1xf32> to vector<8x128xf32>
    %15 = arith.mulf %13, %14 : vector<8x128xf32>
    %c0_6 = arith.constant 0 : index
    %c0_7 = arith.constant 0 : index
    %16 = vector.load %arg4[%c0_6, %c0_7] : memref<8x128xf32, #tpu.memory_space<vmem>>, vector<8x128xf32>
    tpu.vector_store %arg4[%c0_6, %c0_7], %15 {strides = array<i32>} : memref<8x128xf32, #tpu.memory_space<vmem>>, vector<8x128xf32>,
    return
  }
  func.func @transform_0(%arg0: i32) -> (i32, i32) {
    %c0_i32 = arith.constant 0 : i32
    %c0_i32_0 = arith.constant 0 : i32
    return %arg0, %c0_i32 : i32, i32
  }
  func.func @transform_1(%arg0: i32) -> (i32, i32) {
    %c0_i32 = arith.constant 0 : i32
    %c0_i32_0 = arith.constant 0 : i32
    return %arg0, %c0_i32 : i32, i32
  }
  func.func @transform_2(%arg0: i32) -> (i32, i32) {
    %c0_i32 = arith.constant 0 : i32
    %c0_i32_0 = arith.constant 0 : i32
    return %arg0, %c0_i32 : i32, i32
  }
  func.func @transform_3(%arg0: i32) -> (i32, i32) {
    %c0_i32 = arith.constant 0 : i32
    %c0_i32_0 = arith.constant 0 : i32
    return %arg0, %c0_i32 : i32, i32
  }
}

</mosaic_0001>

<llo_original>
// kernel: adaround_quantizer_forward.1
$region0: #{adaround_quantizer_forward.1}
  #allocation0 [shape = 'u32[]', space=smem, size = 0x4, offset = 0x4, fixed_abs, tag = 'smem constant byte address 0x4 - core index']
  #allocation1 [shape = 'u32[72,128]{1,0:T(1,128)}', space=vmem, size = 0x9000, scoped, tag = 'internal scratch']
  %s0 = inlined_call_operand.vmem [shape: f32[16,128], index: 0, kind: input, shape index: {}, may-alias: {0,3}]
  %s1 = inlined_call_operand.vmem [shape: f32[16,1], index: 1, kind: input, shape index: {}]
  %s2 = inlined_call_operand.vmem [shape: f32[16,1], index: 2, kind: input, shape index: {}]
  %s3 = inlined_call_operand.vmem [shape: f32[16,128], index: 3, kind: output, shape index: {}, may-alias: {0,3}]
  %s4 = sld [smem:[#allocation0]]
  $region45: #{adaround_quantizer_forward.1} parent=0
    _
  %s6 = ssub.s32 1, %s4
  %s7 = scalar_select 0, %s6, %s4
  loop: start=0, step=1, limit=4
  $region2: #{adaround_quantizer_forward.1} parent=0 // loop_pre_header
    _
  $region3: #{adaround_quantizer_forward.1} parent=0 // loop_header
    %s9 = sphi 0, %s13
    %p10 = scmp.ge.s32.totalorder %s9, 4
    %s19 = sphi 0, %s21
    %s22 = sphi 0, %s19
    %s23 = sphi 0, %s22
    %s39 = sphi 0, %s23
    %s45 = sphi 0, %s47
    %s48 = sphi 0, %s45
    %s49 = sphi 0, %s48
    %s65 = sphi 0, %s49
    %s71 = sphi 0, %s73
    %s74 = sphi 0, %s71
    %s75 = sphi 0, %s74
    %s91 = sphi 0, %s75
    %s97 = sphi 0, %s99
    %s100 = sphi 0, %s97
    %s101 = sphi 0, %s100
    %s117 = sphi 0, %s101
  $region4: #{adaround_quantizer_forward.1} parent=0 // loop_header_branch
    %12 = sbr.rel (%p10) target = $region8
  $region5: #{adaround_quantizer_forward.1} parent=0 // loop_body
    %s14 = ssub.s32 %s9, 1
    %s15 = ssub.s32 %s9, 2
    %s16 = sadd.s32 %s9, 1
    %s17 = ssub.s32 %s9, %s16
    %p18 = scmp.eq.s32.totalorder %s17, 0
    %s20 = sadd.s32 %s19, 1
    %s21 = scalar_select %p18, %s19, %s20
    %p24 = pneg %p18
    %p25 = scmp.eq.s32.totalorder %s9, 1
    %p26 = por %p24, %p25
    %p27 = scmp.ne.s32.totalorder %s19, %s22
    %p28 = scmp.eq.s32.totalorder %s9, 0
    %p29 = por %p27, %p28
    %p30 = scmp.ne.s32.totalorder %s19, %s22
    %p31 = scmp.eq.s32.totalorder %s14, 1
    %p32 = por %p30, %p31
    %p33 = scmp.ne.s32.totalorder %s22, %s23
    %p34 = scmp.eq.s32.totalorder %s14, 0
    %p35 = por %p33, %p34
    %p36 = scmp.ne.s32.totalorder %s22, %s23
    %p37 = scmp.eq.s32.totalorder %s15, 1
    %p38 = por %p36, %p37
    %p40 = scmp.ne.s32.totalorder %s23, %s39
    %p41 = scmp.eq.s32.totalorder %s15, 0
    %p42 = por %p40, %p41
    %s43 = ssub.s32 %s9, %s16
    %p44 = scmp.eq.s32.totalorder %s43, 0
    %s46 = sadd.s32 %s45, 1
    %s47 = scalar_select %p44, %s45, %s46
    %p50 = pneg %p44
    %p51 = scmp.eq.s32.totalorder %s9, 1
    %p52 = por %p50, %p51
    %p53 = scmp.ne.s32.totalorder %s45, %s48
    %p54 = scmp.eq.s32.totalorder %s9, 0
    %p55 = por %p53, %p54
    %p56 = scmp.ne.s32.totalorder %s45, %s48
    %p57 = scmp.eq.s32.totalorder %s14, 1
    %p58 = por %p56, %p57
    %p59 = scmp.ne.s32.totalorder %s48, %s49
    %p60 = scmp.eq.s32.totalorder %s14, 0
    %p61 = por %p59, %p60
    %p62 = scmp.ne.s32.totalorder %s48, %s49
    %p63 = scmp.eq.s32.totalorder %s15, 1
    %p64 = por %p62, %p63
    %p66 = scmp.ne.s32.totalorder %s49, %s65
    %p67 = scmp.eq.s32.totalorder %s15, 0
    %p68 = por %p66, %p67
    %s69 = ssub.s32 %s9, %s16
    %p70 = scmp.eq.s32.totalorder %s69, 0
    %s72 = sadd.s32 %s71, 1
    %s73 = scalar_select %p70, %s71, %s72
    %p76 = pneg %p70
    %p77 = scmp.eq.s32.totalorder %s9, 1
    %p78 = por %p76, %p77
    %p79 = scmp.ne.s32.totalorder %s71, %s74
    %p80 = scmp.eq.s32.totalorder %s9, 0
    %p81 = por %p79, %p80
    %p82 = scmp.ne.s32.totalorder %s71, %s74
    %p83 = scmp.eq.s32.totalorder %s14, 1
    %p84 = por %p82, %p83
    %p85 = scmp.ne.s32.totalorder %s74, %s75
    %p86 = scmp.eq.s32.totalorder %s14, 0
    %p87 = por %p85, %p86
    %p88 = scmp.ne.s32.totalorder %s74, %s75
    %p89 = scmp.eq.s32.totalorder %s15, 1
    %p90 = por %p88, %p89
    %p92 = scmp.ne.s32.totalorder %s75, %s91
    %p93 = scmp.eq.s32.totalorder %s15, 0
    %p94 = por %p92, %p93
    %s95 = ssub.s32 %s9, %s16
    %p96 = scmp.eq.s32.totalorder %s95, 0
    %s98 = sadd.s32 %s97, 1
    %s99 = scalar_select %p96, %s97, %s98
    %p102 = pneg %p96
    %p103 = scmp.eq.s32.totalorder %s9, 1
    %p104 = por %p102, %p103
    %p105 = scmp.ne.s32.totalorder %s97, %s100
    %p106 = scmp.eq.s32.totalorder %s9, 0
    %p107 = por %p105, %p106
    %p108 = scmp.ne.s32.totalorder %s97, %s100
    %p109 = scmp.eq.s32.totalorder %s14, 1
    %p110 = por %p108, %p109
    %p111 = scmp.ne.s32.totalorder %s100, %s101
    %p112 = scmp.eq.s32.totalorder %s14, 0
    %p113 = por %p111, %p112
    %p114 = scmp.ne.s32.totalorder %s100, %s101
    %p115 = scmp.eq.s32.totalorder %s15, 1
    %p116 = por %p114, %p115
    %p118 = scmp.ne.s32.totalorder %s101, %s117
    %p119 = scmp.eq.s32.totalorder %s15, 0
    %p120 = por %p118, %p119
    %p121 = scmp.le.s32.totalorder 1, %s9
    %p122 = scmp.lt.s32.totalorder %s9, 3
    %p123 = pnand %p121, %p122
    %p124 = pneg %p123
    // Predicated region
    $region9: #{adaround_quantizer_forward.1} parent=5 // pred_check
      _
    $region10: #{adaround_quantizer_forward.1} parent=5 // pred_check_branch
      %126 = sbr.rel (%p123) target = $region12
    $region11: #{adaround_quantizer_forward.1} parent=5 // pred_region
      %s127 = ssub.s32 %s9, 1
    $region12: #{adaround_quantizer_forward.1} parent=5 // pred_fallthru
      _
    %p128 = scmp.lt.s32.totalorder %s9, 2
    // Predicated region
    $region13: #{adaround_quantizer_forward.1} parent=5 // pred_check
      %p129 = pneg %p128
    $region14: #{adaround_quantizer_forward.1} parent=5 // pred_check_branch
      %131 = sbr.rel (%p129) target = $region16
    $region15: #{adaround_quantizer_forward.1} parent=5 // pred_region
      // Predicated region
      $region17: #{adaround_quantizer_forward.1} parent=15 // pred_check
        %p132 = pneg %p29
      $region18: #{adaround_quantizer_forward.1} parent=15 // pred_check_branch
        %134 = sbr.rel (%p132) target = $region20
      $region19: #{adaround_quantizer_forward.1} parent=15 // pred_region
        %p135 = scmp.lt.s32.totalorder %s9, 1
        %s136 = scalar_select %p135, %s9, 1
        %s137 = smul.addr %s136, 8
        %s138 = scalar_lea.vmem %s0, %s137
      $region20: #{adaround_quantizer_forward.1} parent=15 // pred_fallthru
        _
      // Predicated region
      $region21: #{adaround_quantizer_forward.1} parent=15 // pred_check
        %p139 = pneg %p55
      $region22: #{adaround_quantizer_forward.1} parent=15 // pred_check_branch
        %141 = sbr.rel (%p139) target = $region24
      $region23: #{adaround_quantizer_forward.1} parent=15 // pred_region
        %p142 = scmp.lt.s32.totalorder %s9, 1
        %s143 = scalar_select %p142, %s9, 1
        %s144 = smul.addr %s143, 8
        %s145 = scalar_lea.vmem %s1, %s144
      $region24: #{adaround_quantizer_forward.1} parent=15 // pred_fallthru
        _
      // Predicated region
      $region25: #{adaround_quantizer_forward.1} parent=15 // pred_check
        %p146 = pneg %p81
      $region26: #{adaround_quantizer_forward.1} parent=15 // pred_check_branch
        %148 = sbr.rel (%p146) target = $region28
      $region27: #{adaround_quantizer_forward.1} parent=15 // pred_region
        %p149 = scmp.lt.s32.totalorder %s9, 1
        %s150 = scalar_select %p149, %s9, 1
        %s151 = smul.addr %s150, 8
        %s152 = scalar_lea.vmem %s2, %s151
      $region28: #{adaround_quantizer_forward.1} parent=15 // pred_fallthru
        _
    $region16: #{adaround_quantizer_forward.1} parent=5 // pred_fallthru
      _
    %p153 = scmp.le.s32.totalorder 1, %s9
    %p154 = scmp.lt.s32.totalorder %s9, 3
    %p155 = pnand %p153, %p154
    %p156 = pneg %p155
    // Predicated region
    $region29: #{adaround_quantizer_forward.1} parent=5 // pred_check
      _
    $region30: #{adaround_quantizer_forward.1} parent=5 // pred_check_branch
      %158 = sbr.rel (%p155) target = $region32
    $region31: #{adaround_quantizer_forward.1} parent=5 // pred_region
      %s159 = ssub.s32 %s9, 1
      %p160 = scmp.lt.s32.totalorder %s14, 1
      %s161 = scalar_select %p160, %s14, 1
      %s162 = smul.addr %s161, 8
      %s163 = scalar_lea.vmem %s0, %s162
      %p164 = pneg %p35
      %p165 = pneg %p32
      %p166 = scmp.lt.s32.totalorder %s14, 1
      %s167 = scalar_select %p166, %s14, 1
      %s168 = smul.addr %s167, 8
      %s169 = scalar_lea.vmem %s1, %s168
      %p170 = pneg %p61
      %p171 = pneg %p58
      %p172 = scmp.lt.s32.totalorder %s14, 1
      %s173 = scalar_select %p172, %s14, 1
      %s174 = smul.addr %s173, 8
      %s175 = scalar_lea.vmem %s2, %s174
      %p176 = pneg %p87
      %p177 = pneg %p84
      %p178 = pneg %p113
      %p179 = pneg %p110
      %p180 = scmp.lt.s32.totalorder %s14, 1
      %s181 = scalar_select %p180, %s14, 1
      %s182 = smul.addr %s181, 8
      %s183 = scalar_lea.vmem %s3, %s182
      %p184 = scmp.lt.s32.totalorder %s14, 1
      %s185 = scalar_select %p184, %s14, 1
      %s186 = smul.addr %s185, 8
      %s187 = scalar_lea.vmem %s0, %s186
      %p188 = scmp.lt.s32.totalorder %s14, 1
      %s189 = scalar_select %p188, %s14, 1
      %s190 = smul.addr %s189, 8
      %s191 = scalar_lea.vmem %s1, %s190
      %p192 = scmp.lt.s32.totalorder %s14, 1
      %s193 = scalar_select %p192, %s14, 1
      %s194 = smul.addr %s193, 8
      %s195 = scalar_lea.vmem %s2, %s194
      %p196 = scmp.lt.s32.totalorder %s14, 1
      %s197 = scalar_select %p196, %s14, 1
      %s198 = smul.addr %s197, 8
      %s199 = scalar_lea.vmem %s3, %s198
      %v200 = vld [vmem:[%s187] sm:$0xff]
      %v201 = vld [vmem:[%s191] sm:$0xff]
      %v202 = vld [vmem:[%s195] sm:$0xff]
      %204 = vset.pattern.permute.xlu0 0
      %205 = vperm.xlu0 %204, %v201
      %v206 = vpop.permute.xlu0 %205
      %v208 = vrcp.pop %v206
      %v209 = vmul.f32 %v206, %v208
      %v210 = vsub.f32 1.0, %v209
      %v211 = vmul.f32 %v208, %v210
      %v212 = vadd.f32 %v208, %v211
      %vm213 = vweird.f32 %v206
      %vm214 = vweird.f32 %v208
      %vm215 = vmor %vm213, %vm214
      %v216 = vsel %vm215, %v208, %v212
      %v217 = vand.u32 2147483647, %v206
      %vm218 = vcmp.eq.f32.partialorder %v217, 8.507059e+37
      %v219 = vand.u32 %v206, 2147483648
      %v220 = vor.u32 1.1754944e-38, %v219
      %v221 = vsel %vm218, %v220, %v216
      %v222 = vmul.f32 %v200, %v221
      %224 = vset.pattern.permute.xlu0 0
      %225 = vperm.xlu0 %224, %v202
      %v226 = vpop.permute.xlu0 %225
      %v228 = vadd.f32 %v222, %v226
      %v229 = vround.ne.pseudo %v228
      %v230 = vmax.f32 %v229, -128.0
      %v231 = vmin.f32 %v230, 127.0
      %v232 = vsub.f32 %v231, %v226
      %v233 = vmul.f32 %v232, %v206
      %234 = vst [vmem:[%s199] sm:$0xff] %v233
      %p235 = scmp.lt.s32.totalorder %s14, 1
      %s236 = scalar_select %p235, %s14, 1
      %s237 = smul.addr %s236, 8
      %s238 = scalar_lea.vmem %s3, %s237
      // Predicated region
      $region33: #{adaround_quantizer_forward.1} parent=31 // pred_check
        %p239 = pneg %p110
      $region34: #{adaround_quantizer_forward.1} parent=31 // pred_check_branch
        %241 = sbr.rel (%p239) target = $region36
      $region35: #{adaround_quantizer_forward.1} parent=31 // pred_region
        _
      $region36: #{adaround_quantizer_forward.1} parent=31 // pred_fallthru
        _
    $region32: #{adaround_quantizer_forward.1} parent=5 // pred_fallthru
      _
    %p242 = scmp.le.s32.totalorder 2, %s9
    // Predicated region
    $region37: #{adaround_quantizer_forward.1} parent=5 // pred_check
      %p243 = pneg %p242
    $region38: #{adaround_quantizer_forward.1} parent=5 // pred_check_branch
      %245 = sbr.rel (%p243) target = $region40
    $region39: #{adaround_quantizer_forward.1} parent=5 // pred_region
      %s246 = ssub.s32 %s9, 2
      // Predicated region
      $region41: #{adaround_quantizer_forward.1} parent=39 // pred_check
        %p247 = pneg %p116
      $region42: #{adaround_quantizer_forward.1} parent=39 // pred_check_branch
        %249 = sbr.rel (%p247) target = $region44
      $region43: #{adaround_quantizer_forward.1} parent=39 // pred_region
        %p250 = scmp.lt.s32.totalorder %s15, 1
        %s251 = scalar_select %p250, %s15, 1
        %s252 = smul.addr %s251, 8
        %s253 = scalar_lea.vmem %s3, %s252
      $region44: #{adaround_quantizer_forward.1} parent=39 // pred_fallthru
        _
    $region40: #{adaround_quantizer_forward.1} parent=5 // pred_fallthru
      _
  $region6: #{adaround_quantizer_forward.1} parent=0 // loop_footer
    %s13 = sadd.s32 1, %s9
  $region7: #{adaround_quantizer_forward.1} parent=0 // loop_footer_branch
    %8 = sbr.rel target = $region3
  $region8: #{adaround_quantizer_forward.1} parent=0 // loop_exit
    _

</llo_original>
